<compile_context>
chip_gen: v7x
topology: tpu7x:2x2x1
jax: 0.10.0
libtpu: 0.0.40
codegen_flags: <defaults>
</compile_context>

<pallas_src>
import functools
import math

import jax
import jax.numpy as jnp
from jax import lax
from jax.experimental import pallas as pl
from jax.experimental.pallas import tpu as pltpu


def _gru_cell_kernel(x_ref, h_ref, wih_ref, whhx_ref, bi_ref, bhn_ref, out_ref):
    """One GRU-cell step on a row tile, computed in transposed (gate-major) form.

    x_ref   : (TN, Din)  input rows (natural layout)
    h_ref   : (TN, H)    hidden rows (natural layout)
    wih_ref : (3H, Din)  PyTorch weight_ih_l0, gate order [r|z|n]
    whhx_ref: (4H, H)    [weight_hh_l0 ; I_H]  (identity block emits h^T for free)
    bi_ref  : (3H, 1)    [b_ir+b_hr | b_iz+b_hz | b_in]
    bhn_ref : (H, 1)     b_hn (must stay inside r * (.))
    out_ref : (TN, H)    h' rows (natural layout)
    """
    H = out_ref.shape[1]
    # Contract the last dim of both operands: (G, K) x (TN, K) -> (G, TN).
    # Gates live on sublanes (multiples of 8), the big N dim on the 128 lanes.
    dn = (((1,), (1,)), ((), ()))

    gi = lax.dot_general(wih_ref[...], x_ref[...], dn,
                         preferred_element_type=jnp.float32) + bi_ref[...]
    gh = lax.dot_general(whhx_ref[...], h_ref[...], dn,
                         preferred_element_type=jnp.float32)

    # r and z with a single fused activation over the stacked 2H slice.
    # sigmoid(x) == 0.5 * tanh(0.5 * x) + 0.5  -> one EUP op, not exp + recip.
    rz = 0.5 * jnp.tanh(0.5 * (gi[:2 * H] + gh[:2 * H])) + 0.5
    r = rz[:H]
    z = rz[H:2 * H]

    n = jnp.tanh(gi[2 * H:] + r * (gh[2 * H:3 * H] + bhn_ref[...]))
    h_t = gh[3 * H:]                       # == h^T (exact, via identity block)

    # (1 - z) * n + z * h  ==  n + z * (h - n)
    h_new = n + z * (h_t - n)              # (H, TN), f32

    # Back to natural row-major layout for the store (XLU transpose, hidden
    # under the tile DMA; last dim equals the full array dim H).
    out_ref[...] = h_new.T.astype(out_ref.dtype)


def _choose_tile_n(n):
    """Row tile: multiple of 128, big enough to amortize the ~0.35 us/step
    pipeline overhead, capped at 2048, and aiming for >=2 grid steps so the
    'parallel' axis can be sharded across v7x's two TensorCores."""
    n128 = ((n + 127) // 128) * 128
    if n128 <= 128:
        return 128
    half = ((n128 // 2 + 127) // 128) * 128
    return min(half, 2048)


@functools.partial(jax.jit, static_argnames=("tile_n",))
def gru_forward(x, h0, w_ih, w_hh, b_ih, b_hh, *, tile_n=None):
    """One GRU step.  x: (N, Din), h0: (N, H) -> (N, H).

    w_ih: (3H, Din), w_hh: (3H, H)  (PyTorch nn.GRU layout, gate order [r|z|n]).
    """
    N, Din = x.shape
    H = h0.shape[-1]
    assert w_ih.shape == (3 * H, Din)
    assert w_hh.shape == (3 * H, H)
    assert H % 8 == 0, "hidden_size must be a multiple of 8 (sublane-aligned gates)"

    if tile_n is None:
        tile_n = _choose_tile_n(N)
    assert tile_n % 128 == 0, "tile_n must be a multiple of 128 (lane-dense)"

    n_pad = ((N + tile_n - 1) // tile_n) * tile_n

    # Natural (rows, features) layout everywhere; only pad rows when needed.
    if n_pad != N:
        x = jnp.pad(x, ((0, n_pad - N), (0, 0)))
        h0 = jnp.pad(h0, ((0, n_pad - N), (0, 0)))

    # Tiny, weight-sized parameter prep (fused under jit):
    #   * r/z biases pre-summed; b_hn kept separate (it sits inside r * (.)).
    #   * W_hh extended with an identity block so the hh-matmul also emits h^T.
    b_i = jnp.concatenate([b_ih[:2 * H] + b_hh[:2 * H], b_ih[2 * H:]])
    b_i = b_i.reshape(3 * H, 1).astype(jnp.float32)
    b_hn = b_hh[2 * H:].reshape(H, 1).astype(jnp.float32)
    w_hh_x = jnp.concatenate([w_hh, jnp.eye(H, dtype=w_hh.dtype)], axis=0)  # (4H, H)

    grid = (n_pad // tile_n,)
    itemsize = x.dtype.itemsize
    flops = 2 * n_pad * (3 * H * Din + 4 * H * H)
    bytes_accessed = (n_pad * (Din + 2 * H) * itemsize
                      + (w_ih.size + w_hh_x.size) * itemsize)

    out = pl.pallas_call(
        _gru_cell_kernel,
        out_shape=jax.ShapeDtypeStruct((n_pad, H), h0.dtype),
        grid_spec=pl.GridSpec(
            grid=grid,
            in_specs=[
                pl.BlockSpec((tile_n, Din), lambda i: (i, 0)),   # x rows
                pl.BlockSpec((tile_n, H), lambda i: (i, 0)),     # h rows
                pl.BlockSpec((3 * H, Din), lambda i: (0, 0)),    # W_ih (VMEM-resident)
                pl.BlockSpec((4 * H, H), lambda i: (0, 0)),      # [W_hh; I] (resident)
                pl.BlockSpec((3 * H, 1), lambda i: (0, 0)),      # fused r/z/n bias
                pl.BlockSpec((H, 1), lambda i: (0, 0)),          # b_hn
            ],
            out_specs=pl.BlockSpec((tile_n, H), lambda i: (i, 0)),
        ),
        compiler_params=pltpu.CompilerParams(
            dimension_semantics=("parallel",),
        ),
        cost_estimate=pl.CostEstimate(
            flops=flops,
            transcendentals=3 * H * n_pad,
            bytes_accessed=bytes_accessed,
        ),
    )(x, h0, w_ih, w_hh_x, b_i, b_hn)

    return out[:N] if n_pad != N else out


def init_gru_params(key, input_size, hidden_size, dtype=jnp.float32):
    """Deterministic init matching nn.GRU's U(-1/sqrt(H), 1/sqrt(H)) scheme."""
    k = 1.0 / math.sqrt(hidden_size)
    k1, k2, k3, k4 = jax.random.split(key, 4)
    # PyTorch layout: weight_ih_l0 (3H, Din), weight_hh_l0 (3H, H).
    w_ih = jax.random.uniform(k1, (3 * hidden_size, input_size), dtype, -k, k)
    w_hh = jax.random.uniform(k2, (3 * hidden_size, hidden_size), dtype, -k, k)
    b_ih = jax.random.uniform(k3, (3 * hidden_size,), dtype, -k, k)
    b_hh = jax.random.uniform(k4, (3 * hidden_size,), dtype, -k, k)
    return w_ih, w_hh, b_ih, b_hh


def gru_reference(x, h, w_ih, w_hh, b_ih, b_hh):
    """Pure-JAX reference of the single GRU step (PyTorch gate order r,z,n)."""
    H = h.shape[-1]
    gi = x @ w_ih.T + b_ih
    gh = h @ w_hh.T + b_hh
    i_r, i_z, i_n = gi[:, :H], gi[:, H:2 * H], gi[:, 2 * H:]
    h_r, h_z, h_n = gh[:, :H], gh[:, H:2 * H], gh[:, 2 * H:]
    r = jax.nn.sigmoid(i_r + h_r)
    z = jax.nn.sigmoid(i_z + h_z)
    n = jnp.tanh(i_n + r * h_n)
    return (1.0 - z) * n + z * h


if __name__ == "__main__":
    # Small shapes consistent with the module: N nodes, input_size, hidden_size.
    N, INPUT_SIZE, HIDDEN_SIZE = 16, 32, 32

    key = jax.random.PRNGKey(0)
    kx, kh, kp = jax.random.split(key, 3)

    x = jax.random.normal(kx, (N, INPUT_SIZE), jnp.float32)   # "x" in forward
    y = jax.random.normal(kh, (N, HIDDEN_SIZE), jnp.float32)  # "y" (initial hidden)

    w_ih, w_hh, b_ih, b_hh = init_gru_params(kp, INPUT_SIZE, HIDDEN_SIZE)

    out = gru_forward(x, y, w_ih, w_hh, b_ih, b_hh)
    out = jax.block_until_ready(out)

    ref = gru_reference(x, y, w_ih, w_hh, b_ih, b_hh)
    assert out.shape == (N, HIDDEN_SIZE)
    assert jnp.allclose(out, ref, atol=1e-5, rtol=1e-5), "Pallas GRU mismatch vs reference"

    # Larger, multi-tile case (exercises padding + a 2-step 'parallel' grid).
    N2 = 1000
    x2 = jax.random.normal(kx, (N2, INPUT_SIZE), jnp.float32)
    y2 = jax.random.normal(kh, (N2, HIDDEN_SIZE), jnp.float32)
    out2 = jax.block_until_ready(gru_forward(x2, y2, w_ih, w_hh, b_ih, b_hh))
    ref2 = gru_reference(x2, y2, w_ih, w_hh, b_ih, b_hh)
    assert out2.shape == (N2, HIDDEN_SIZE)
    assert jnp.allclose(out2, ref2, atol=1e-5, rtol=1e-5), "Pallas GRU mismatch (multi-tile)"

    # Explicit-tile path (static tile_n argument, exact divide -> no padding).
    N3 = 1024
    x3 = jax.random.normal(kx, (N3, INPUT_SIZE), jnp.float32)
    y3 = jax.random.normal(kh, (N3, HIDDEN_SIZE), jnp.float32)
    out3 = jax.block_until_ready(gru_forward(x3, y3, w_ih, w_hh, b_ih, b_hh, tile_n=512))
    ref3 = gru_reference(x3, y3, w_ih, w_hh, b_ih, b_hh)
    assert jnp.allclose(out3, ref3, atol=1e-5, rtol=1e-5), "Pallas GRU mismatch (tile_n=512)"

    print("KERNEL_OK")
</pallas_src>

<mosaic_0001>
module attributes {stable_mosaic.version = 11 : i64} {
  func.func @_gru_cell_kernel(%arg0: i32, %arg1: memref<128x32xf32, #tpu.memory_space<vmem>>, %arg2: memref<128x32xf32, #tpu.memory_space<vmem>>, %arg3: memref<96x32xf32, #tpu.memory_space<vmem>>, %arg4: memref<128x32xf32, #tpu.memory_space<vmem>>, %arg5: memref<96x1xf32, #tpu.memory_space<vmem>>, %arg6: memref<32x1xf32, #tpu.memory_space<vmem>>, %arg7: memref<128x32xf32, #tpu.memory_space<vmem>>) attributes {dimension_semantics = [#tpu.dimension_semantics<parallel>], iteration_bounds = array<i64: 1>, scalar_prefetch = 0 : i64, scratch_operands = 0 : i64, tpu.core_type = #tpu.core_type<tc>, window_params = [{transform_indices = @transform_0, window_bounds = array<i64: 128, 32>}, {transform_indices = @transform_1, window_bounds = array<i64: 128, 32>}, {pipeline_mode = #tpu.pipeline_mode<synchronous>, transform_indices = @transform_2, window_bounds = array<i64: 96, 32>}, {pipeline_mode = #tpu.pipeline_mode<synchronous>, transform_indices = @transform_3, window_bounds = array<i64: 128, 32>}, {pipeline_mode = #tpu.pipeline_mode<synchronous>, transform_indices = @transform_4, window_bounds = array<i64: 96, 1>}, {pipeline_mode = #tpu.pipeline_mode<synchronous>, transform_indices = @transform_5, window_bounds = array<i64: 32, 1>}, {transform_indices = @transform_6, window_bounds = array<i64: 128, 32>}]} {
    %c0 = arith.constant 0 : index
    %c0_0 = arith.constant 0 : index
    %0 = vector.load %arg3[%c0, %c0_0] : memref<96x32xf32, #tpu.memory_space<vmem>>, vector<96x32xf32>
    %c0_1 = arith.constant 0 : index
    %c0_2 = arith.constant 0 : index
    %1 = vector.load %arg1[%c0_1, %c0_2] : memref<128x32xf32, #tpu.memory_space<vmem>>, vector<128x32xf32>
    %cst = arith.constant dense<0.000000e+00> : vector<96x128xf32>
    %2 = tpu.matmul %0, %1, %cst {dimension_numbers = #tpu.dot_dimension_numbers<[1], [1], [0], [0], [0, 0, 1, 0], [], []>} : vector<96x32xf32>, vector<128x32xf32>, vector<96x128xf32> -> vector<96x128xf32>
    %c0_3 = arith.constant 0 : index
    %c0_4 = arith.constant 0 : index
    %3 = vector.load %arg5[%c0_3, %c0_4] : memref<96x1xf32, #tpu.memory_space<vmem>>, vector<96x1xf32>
    %4 = vector.broadcast %3 : vector<96x1xf32> to vector<96x128xf32>
    %5 = arith.addf %2, %4 : vector<96x128xf32>
    %c0_5 = arith.constant 0 : index
    %c0_6 = arith.constant 0 : index
    %6 = vector.load %arg4[%c0_5, %c0_6] : memref<128x32xf32, #tpu.memory_space<vmem>>, vector<128x32xf32>
    %c0_7 = arith.constant 0 : index
    %c0_8 = arith.constant 0 : index
    %7 = vector.load %arg2[%c0_7, %c0_8] : memref<128x32xf32, #tpu.memory_space<vmem>>, vector<128x32xf32>
    %cst_9 = arith.constant dense<0.000000e+00> : vector<128x128xf32>
    %8 = tpu.matmul %6, %7, %cst_9 {dimension_numbers = #tpu.dot_dimension_numbers<[1], [1], [0], [0], [0, 0, 1, 0], [], []>} : vector<128x32xf32>, vector<128x32xf32>, vector<128x128xf32> -> vector<128x128xf32>
    %9 = vector.extract_strided_slice %5 {offsets = [0, 0], sizes = [64, 128], strides = [1, 1]} : vector<96x128xf32> to vector<64x128xf32>
    %10 = vector.extract_strided_slice %8 {offsets = [0, 0], sizes = [64, 128], strides = [1, 1]} : vector<128x128xf32> to vector<64x128xf32>
    %11 = arith.addf %9, %10 : vector<64x128xf32>
    %cst_10 = arith.constant 5.000000e-01 : f32
    %12 = vector.broadcast %cst_10 : f32 to vector<64x128xf32>
    %13 = arith.mulf %12, %11 : vector<64x128xf32>
    %14 = math.tanh %13 : vector<64x128xf32>
    %cst_11 = arith.constant 5.000000e-01 : f32
    %15 = vector.broadcast %cst_11 : f32 to vector<64x128xf32>
    %16 = arith.mulf %15, %14 : vector<64x128xf32>
    %cst_12 = arith.constant 5.000000e-01 : f32
    %17 = vector.broadcast %cst_12 : f32 to vector<64x128xf32>
    %18 = arith.addf %16, %17 : vector<64x128xf32>
    %19 = vector.extract_strided_slice %18 {offsets = [0, 0], sizes = [32, 128], strides = [1, 1]} : vector<64x128xf32> to vector<32x128xf32>
    %20 = vector.extract_strided_slice %18 {offsets = [32, 0], sizes = [32, 128], strides = [1, 1]} : vector<64x128xf32> to vector<32x128xf32>
    %21 = vector.extract_strided_slice %5 {offsets = [64, 0], sizes = [32, 128], strides = [1, 1]} : vector<96x128xf32> to vector<32x128xf32>
    %22 = vector.extract_strided_slice %8 {offsets = [64, 0], sizes = [32, 128], strides = [1, 1]} : vector<128x128xf32> to vector<32x128xf32>
    %c0_13 = arith.constant 0 : index
    %c0_14 = arith.constant 0 : index
    %23 = vector.load %arg6[%c0_13, %c0_14] : memref<32x1xf32, #tpu.memory_space<vmem>>, vector<32x1xf32>
    %24 = vector.broadcast %23 : vector<32x1xf32> to vector<32x128xf32>
    %25 = arith.addf %22, %24 : vector<32x128xf32>
    %26 = arith.mulf %19, %25 : vector<32x128xf32>
    %27 = arith.addf %21, %26 : vector<32x128xf32>
    %28 = math.tanh %27 : vector<32x128xf32>
    %29 = vector.extract_strided_slice %8 {offsets = [96, 0], sizes = [32, 128], strides = [1, 1]} : vector<128x128xf32> to vector<32x128xf32>
    %30 = arith.subf %29, %28 : vector<32x128xf32>
    %31 = arith.mulf %20, %30 : vector<32x128xf32>
    %32 = arith.addf %28, %31 : vector<32x128xf32>
    %33 = tpu.transpose %32, [1, 0] : vector<32x128xf32> -> vector<128x32xf32>
    %c0_15 = arith.constant 0 : index
    %c0_16 = arith.constant 0 : index
    %34 = vector.load %arg7[%c0_15, %c0_16] : memref<128x32xf32, #tpu.memory_space<vmem>>, vector<128x32xf32>
    tpu.vector_store %arg7[%c0_15, %c0_16], %33 {strides = array<i32>} : memref<128x32xf32, #tpu.memory_space<vmem>>, vector<128x32xf32>,
    return
  }
  func.func @transform_0(%arg0: i32) -> (i32, i32) {
    %c0_i32 = arith.constant 0 : i32
    %c0_i32_0 = arith.constant 0 : i32
    return %arg0, %c0_i32 : i32, i32
  }
  func.func @transform_1(%arg0: i32) -> (i32, i32) {
    %c0_i32 = arith.constant 0 : i32
    %c0_i32_0 = arith.constant 0 : i32
    return %arg0, %c0_i32 : i32, i32
  }
  func.func @transform_2(%arg0: i32) -> (i32, i32) {
    %c0_i32 = arith.constant 0 : i32
    %c0_i32_0 = arith.constant 0 : i32
    %c0_i32_1 = arith.constant 0 : i32
    return %c0_i32, %c0_i32_0 : i32, i32
  }
  func.func @transform_3(%arg0: i32) -> (i32, i32) {
    %c0_i32 = arith.constant 0 : i32
    %c0_i32_0 = arith.constant 0 : i32
    %c0_i32_1 = arith.constant 0 : i32
    return %c0_i32, %c0_i32_0 : i32, i32
  }
  func.func @transform_4(%arg0: i32) -> (i32, i32) {
    %c0_i32 = arith.constant 0 : i32
    %c0_i32_0 = arith.constant 0 : i32
    %c0_i32_1 = arith.constant 0 : i32
    return %c0_i32, %c0_i32_0 : i32, i32
  }
  func.func @transform_5(%arg0: i32) -> (i32, i32) {
    %c0_i32 = arith.constant 0 : i32
    %c0_i32_0 = arith.constant 0 : i32
    %c0_i32_1 = arith.constant 0 : i32
    return %c0_i32, %c0_i32_0 : i32, i32
  }
  func.func @transform_6(%arg0: i32) -> (i32, i32) {
    %c0_i32 = arith.constant 0 : i32
    %c0_i32_0 = arith.constant 0 : i32
    return %arg0, %c0_i32 : i32, i32
  }
}

</mosaic_0001>

<llo_original>
// kernel: gru_forward.1
$region0: #{gru_forward.1}
  #allocation0 [shape = 'u32[]', space=smem, size = 0x4, offset = 0x4, fixed_abs, tag = 'smem constant byte address 0x4 - core index']
  #allocation1 [shape = 'u32[144,128]{1,0:T(1,128)}', space=vmem, size = 0x12000, scoped, tag = 'internal scratch']
  %s0 = inlined_call_operand.vmem [shape: f32[128,32], index: 0, kind: input, shape index: {}]
  %s1 = inlined_call_operand.vmem [shape: f32[128,32], index: 1, kind: input, shape index: {}]
  %s2 = inlined_call_operand.vmem [shape: f32[96,32], index: 2, kind: input, shape index: {}]
  %s3 = inlined_call_operand.vmem [shape: f32[128,32], index: 3, kind: input, shape index: {}]
  %s4 = inlined_call_operand.vmem [shape: f32[96,1], index: 4, kind: input, shape index: {}]
  %s5 = inlined_call_operand.vmem [shape: f32[32,1], index: 5, kind: input, shape index: {}]
  %s6 = inlined_call_operand.vmem [shape: f32[128,32], index: 6, kind: output, shape index: {}]
  %s7 = sld [smem:[#allocation0]]
  $region34: #{gru_forward.1} parent=0
    _
  %s9 = ssub.s32 1, %s7
  %s10 = scalar_select 0, %s9, %s7
  // Predicated region
  $region2: #{gru_forward.1} parent=0 // pred_check
    _
  $region3: #{gru_forward.1} parent=0 // pred_check_branch
    %12 = sbr.rel (0) target = $region5
  $region4: #{gru_forward.1} parent=0 // pred_region
    _
  $region5: #{gru_forward.1} parent=0 // pred_fallthru
    _
  // Predicated region
  $region6: #{gru_forward.1} parent=0 // pred_check
    _
  $region7: #{gru_forward.1} parent=0 // pred_check_branch
    %14 = sbr.rel (0) target = $region9
  $region8: #{gru_forward.1} parent=0 // pred_region
    _
  $region9: #{gru_forward.1} parent=0 // pred_fallthru
    _
  // Predicated region
  $region10: #{gru_forward.1} parent=0 // pred_check
    _
  $region11: #{gru_forward.1} parent=0 // pred_check_branch
    %16 = sbr.rel (0) target = $region13
  $region12: #{gru_forward.1} parent=0 // pred_region
    _
  $region13: #{gru_forward.1} parent=0 // pred_fallthru
    _
  // Predicated region
  $region14: #{gru_forward.1} parent=0 // pred_check
    _
  $region15: #{gru_forward.1} parent=0 // pred_check_branch
    %18 = sbr.rel (0) target = $region17
  $region16: #{gru_forward.1} parent=0 // pred_region
    _
  $region17: #{gru_forward.1} parent=0 // pred_fallthru
    _
  // Predicated region
  $region18: #{gru_forward.1} parent=0 // pred_check
    _
  $region19: #{gru_forward.1} parent=0 // pred_check_branch
    %20 = sbr.rel (0) target = $region21
  $region20: #{gru_forward.1} parent=0 // pred_region
    _
  $region21: #{gru_forward.1} parent=0 // pred_fallthru
    _
  // Predicated region
  $region22: #{gru_forward.1} parent=0 // pred_check
    _
  $region23: #{gru_forward.1} parent=0 // pred_check_branch
    %22 = sbr.rel (0) target = $region25
  $region24: #{gru_forward.1} parent=0 // pred_region
    _
  $region25: #{gru_forward.1} parent=0 // pred_fallthru
    _
  %v23 = vld [vmem:[%s2] sm:$0xff]
  %v24 = vld [vmem:[%s2 + $0x8] sm:$0xff]
  %v25 = vld [vmem:[%s2 + $0x10] sm:$0xff]
  %v26 = vld [vmem:[%s2 + $0x18] sm:$0xff]
  %v27 = vld [vmem:[%s2 + $0x20] sm:$0xff]
  %v28 = vld [vmem:[%s2 + $0x28] sm:$0xff]
  %v29 = vld [vmem:[%s2 + $0x30] sm:$0xff]
  %v30 = vld [vmem:[%s2 + $0x38] sm:$0xff]
  %v31 = vld [vmem:[%s2 + $0x40] sm:$0xff]
  %v32 = vld [vmem:[%s2 + $0x48] sm:$0xff]
  %v33 = vld [vmem:[%s2 + $0x50] sm:$0xff]
  %v34 = vld [vmem:[%s2 + $0x58] sm:$0xff]
  %v35 = vld [vmem:[%s0] sm:$0xff]
  %v36 = vld [vmem:[%s0 + $0x8] sm:$0xff]
  %v37 = vld [vmem:[%s0 + $0x10] sm:$0xff]
  %v38 = vld [vmem:[%s0 + $0x18] sm:$0xff]
  %v39 = vld [vmem:[%s0 + $0x20] sm:$0xff]
  %v40 = vld [vmem:[%s0 + $0x28] sm:$0xff]
  %v41 = vld [vmem:[%s0 + $0x30] sm:$0xff]
  %v42 = vld [vmem:[%s0 + $0x38] sm:$0xff]
  %v43 = vld [vmem:[%s0 + $0x40] sm:$0xff]
  %v44 = vld [vmem:[%s0 + $0x48] sm:$0xff]
  %v45 = vld [vmem:[%s0 + $0x50] sm:$0xff]
  %v46 = vld [vmem:[%s0 + $0x58] sm:$0xff]
  %v47 = vld [vmem:[%s0 + $0x60] sm:$0xff]
  %v48 = vld [vmem:[%s0 + $0x68] sm:$0xff]
  %v49 = vld [vmem:[%s0 + $0x70] sm:$0xff]
  %v50 = vld [vmem:[%s0 + $0x78] sm:$0xff]
  %v51 = vld [vmem:[%s4] sm:$0xff]
  %v52 = vld [vmem:[%s4 + $0x8] sm:$0xff]
  %v53 = vld [vmem:[%s4 + $0x10] sm:$0xff]
  %v54 = vld [vmem:[%s4 + $0x18] sm:$0xff]
  %v55 = vld [vmem:[%s4 + $0x20] sm:$0xff]
  %v56 = vld [vmem:[%s4 + $0x28] sm:$0xff]
  %v57 = vld [vmem:[%s4 + $0x30] sm:$0xff]
  %v58 = vld [vmem:[%s4 + $0x38] sm:$0xff]
  %v59 = vld [vmem:[%s4 + $0x40] sm:$0xff]
  %v60 = vld [vmem:[%s4 + $0x48] sm:$0xff]
  %v61 = vld [vmem:[%s4 + $0x50] sm:$0xff]
  %v62 = vld [vmem:[%s4 + $0x58] sm:$0xff]
  %64 = vset.pattern.permute.xlu0 0
  %65 = vperm.xlu0 %64, %v51
  %v66 = vpop.permute.xlu0 %65
  %69 = vset.pattern.permute.xlu0 0
  %70 = vperm.xlu0 %69, %v52
  %v71 = vpop.permute.xlu0 %70
  %74 = vset.pattern.permute.xlu0 0
  %75 = vperm.xlu0 %74, %v53
  %v76 = vpop.permute.xlu0 %75
  %79 = vset.pattern.permute.xlu0 0
  %80 = vperm.xlu0 %79, %v54
  %v81 = vpop.permute.xlu0 %80
  %84 = vset.pattern.permute.xlu0 0
  %85 = vperm.xlu0 %84, %v55
  %v86 = vpop.permute.xlu0 %85
  %89 = vset.pattern.permute.xlu0 0
  %90 = vperm.xlu0 %89, %v56
  %v91 = vpop.permute.xlu0 %90
  %94 = vset.pattern.permute.xlu0 0
  %95 = vperm.xlu0 %94, %v57
  %v96 = vpop.permute.xlu0 %95
  %99 = vset.pattern.permute.xlu0 0
  %100 = vperm.xlu0 %99, %v58
  %v101 = vpop.permute.xlu0 %100
  %104 = vset.pattern.permute.xlu0 0
  %105 = vperm.xlu0 %104, %v59
  %v106 = vpop.permute.xlu0 %105
  %109 = vset.pattern.permute.xlu0 0
  %110 = vperm.xlu0 %109, %v60
  %v111 = vpop.permute.xlu0 %110
  %114 = vset.pattern.permute.xlu0 0
  %115 = vperm.xlu0 %114, %v61
  %v116 = vpop.permute.xlu0 %115
  %119 = vset.pattern.permute.xlu0 0
  %120 = vperm.xlu0 %119, %v62
  %v121 = vpop.permute.xlu0 %120
  %vm123 = vcmask 261120
  %v125 = vsel %vm123, %v23, 0
  %v128 = vsel %vm123, %v24, 0
  %v131 = vsel %vm123, %v25, 0
  %v134 = vsel %vm123, %v26, 0
  %v137 = vsel %vm123, %v27, 0
  %v140 = vsel %vm123, %v28, 0
  %v143 = vsel %vm123, %v29, 0
  %v146 = vsel %vm123, %v30, 0
  %v149 = vsel %vm123, %v31, 0
  %v152 = vsel %vm123, %v32, 0
  %v155 = vsel %vm123, %v33, 0
  %v158 = vsel %vm123, %v34, 0
  %v161 = vsel %vm123, %v35, 0
  %v164 = vsel %vm123, %v36, 0
  %v167 = vsel %vm123, %v37, 0
  %v170 = vsel %vm123, %v38, 0
  %v173 = vsel %vm123, %v39, 0
  %v176 = vsel %vm123, %v40, 0
  %v179 = vsel %vm123, %v41, 0
  %v182 = vsel %vm123, %v42, 0
  %v185 = vsel %vm123, %v43, 0
  %v188 = vsel %vm123, %v44, 0
  %v191 = vsel %vm123, %v45, 0
  %v194 = vsel %vm123, %v46, 0
  %v197 = vsel %vm123, %v47, 0
  %v200 = vsel %vm123, %v48, 0
  %v203 = vsel %vm123, %v49, 0
  %v206 = vsel %vm123, %v50, 0
  %208 = vmatprep.subr.mxu0 0.0
  %209 = vmatpush1.xpose.msra.mxu0 %v161
  %210 = vmatprep.subr.mxu0 0.0
  %211 = vmatpush1.xpose.msra.mxu0 %v164
  %212 = vmatprep.subr.mxu0 0.0
  %213 = vmatpush1.xpose.msra.mxu0 %v167
  %214 = vmatprep.subr.mxu0 0.0
  %215 = vmatpush1.xpose.msra.mxu0 %v170
  %216 = vmatprep.subr.mxu0 0.0
  %217 = vmatpush1.xpose.msra.mxu0 %v173
  %218 = vmatprep.subr.mxu0 0.0
  %219 = vmatpush1.xpose.msra.mxu0 %v176
  %220 = vmatprep.subr.mxu0 0.0
  %221 = vmatpush1.xpose.msra.mxu0 %v179
  %222 = vmatprep.subr.mxu0 0.0
  %223 = vmatpush1.xpose.msra.mxu0 %v182
  %224 = vmatprep.subr.mxu0 0.0
  %225 = vmatpush1.xpose.msra.mxu0 %v185
  %226 = vmatprep.subr.mxu0 0.0
  %227 = vmatpush1.xpose.msra.mxu0 %v188
  %228 = vmatprep.subr.mxu0 0.0
  %229 = vmatpush1.xpose.msra.mxu0 %v191
  %230 = vmatprep.subr.mxu0 0.0
  %231 = vmatpush1.xpose.msra.mxu0 %v194
  %232 = vmatprep.subr.mxu0 0.0
  %233 = vmatpush1.xpose.msra.mxu0 %v197
  %234 = vmatprep.subr.mxu0 0.0
  %235 = vmatpush1.xpose.msra.mxu0 %v200
  %236 = vmatprep.subr.mxu0 0.0
  %237 = vmatpush1.xpose.msra.mxu0 %v203
  %238 = vmatprep.subr.mxu0 0.0
  %239 = vmatpush1.xpose.msra.mxu0 %v206
  %240 = vmatprep.subr.mxu0 0.0
  %241 = vmatpush1.xpose.msra.mxu0 0.0
  %242 = vmatprep.subr.mxu0 0.0
  %243 = vmatpush1.xpose.msra.mxu0 0.0
  %244 = vmatprep.subr.mxu0 0.0
  %245 = vmatpush1.xpose.msra.mxu0 0.0
  %246 = vmatprep.subr.mxu0 0.0
  %247 = vmatpush1.xpose.msra.mxu0 0.0
  %248 = vmatprep.subr.mxu0 0.0
  %249 = vmatpush1.xpose.msra.mxu0 0.0
  %250 = vmatprep.subr.mxu0 0.0
  %251 = vmatpush1.xpose.msra.mxu0 0.0
  %252 = vmatprep.subr.mxu0 0.0
  %253 = vmatpush1.xpose.msra.mxu0 0.0
  %254 = vmatprep.subr.mxu0 0.0
  %255 = vmatpush1.xpose.msra.mxu0 0.0
  %256 = vmatprep.subr.mxu0 0.0
  %257 = vmatpush1.xpose.msra.mxu0 0.0
  %258 = vmatprep.subr.mxu0 0.0
  %259 = vmatpush1.xpose.msra.mxu0 0.0
  %260 = vmatprep.subr.mxu0 0.0
  %261 = vmatpush1.xpose.msra.mxu0 0.0
  %262 = vmatprep.subr.mxu0 0.0
  %263 = vmatpush1.xpose.msra.mxu0 0.0
  %264 = vmatprep.subr.mxu0 0.0
  %265 = vmatpush1.xpose.msra.mxu0 0.0
  %266 = vmatprep.subr.mxu0 0.0
  %267 = vmatpush1.xpose.msra.mxu0 0.0
  %268 = vmatprep.subr.mxu0 0.0
  %269 = vmatpush1.xpose.msra.mxu0 0.0
  %270 = vmatprep.subr.mxu0 0.0
  %271 = vmatpush1.xpose.msra.mxu0 0.0
  %272 = vmatprep.mubr.f32.mxu0 0.0
  %273 = vmatmul.mubr.f32.gmra.mrb[0].mxu0 %v125
  %v274 = vpop.f32.mrb[0].mxu0
  %v275 = vadd.f32 %v66, %v274
  %v276 = vpop.f32.mrb[0].mxu0
  %277 = vmatprep.mubr.f32.mxu0 0.0
  %278 = vmatmul.mubr.f32.gmra.mrb[0].mxu0 %v128
  %v279 = vpop.f32.mrb[0].mxu0
  %v280 = vadd.f32 %v71, %v279
  %v281 = vpop.f32.mrb[0].mxu0
  %282 = vmatprep.mubr.f32.mxu0 0.0
  %283 = vmatmul.mubr.f32.gmra.mrb[0].mxu0 %v131
  %v284 = vpop.f32.mrb[0].mxu0
  %v285 = vadd.f32 %v76, %v284
  %v286 = vpop.f32.mrb[0].mxu0
  %287 = vmatprep.mubr.f32.mxu0 0.0
  %288 = vmatmul.mubr.f32.gmra.mrb[0].mxu0 %v134
  %v289 = vpop.f32.mrb[0].mxu0
  %v290 = vadd.f32 %v81, %v289
  %v291 = vpop.f32.mrb[0].mxu0
  %292 = vmatprep.mubr.f32.mxu0 0.0
  %293 = vmatmul.mubr.f32.gmra.mrb[0].mxu0 %v137
  %v294 = vpop.f32.mrb[0].mxu0
  %v295 = vadd.f32 %v86, %v294
  %v296 = vpop.f32.mrb[0].mxu0
  %297 = vmatprep.mubr.f32.mxu0 0.0
  %298 = vmatmul.mubr.f32.gmra.mrb[0].mxu0 %v140
  %v299 = vpop.f32.mrb[0].mxu0
  %v300 = vadd.f32 %v91, %v299
  %v301 = vpop.f32.mrb[0].mxu0
  %302 = vmatprep.mubr.f32.mxu0 0.0
  %303 = vmatmul.mubr.f32.gmra.mrb[0].mxu0 %v143
  %v304 = vpop.f32.mrb[0].mxu0
  %v305 = vadd.f32 %v96, %v304
  %v306 = vpop.f32.mrb[0].mxu0
  %307 = vmatprep.mubr.f32.mxu0 0.0
  %308 = vmatmul.mubr.f32.gmra.mrb[0].mxu0 %v146
  %v309 = vpop.f32.mrb[0].mxu0
  %v310 = vadd.f32 %v101, %v309
  %v311 = vpop.f32.mrb[0].mxu0
  %312 = vmatprep.mubr.f32.mxu0 0.0
  %313 = vmatmul.mubr.f32.gmra.mrb[0].mxu0 %v149
  %v314 = vpop.f32.mrb[0].mxu0
  %v315 = vadd.f32 %v106, %v314
  %v316 = vpop.f32.mrb[0].mxu0
  %317 = vmatprep.mubr.f32.mxu0 0.0
  %318 = vmatmul.mubr.f32.gmra.mrb[0].mxu0 %v152
  %v319 = vpop.f32.mrb[0].mxu0
  %v320 = vadd.f32 %v111, %v319
  %v321 = vpop.f32.mrb[0].mxu0
  %322 = vmatprep.mubr.f32.mxu0 0.0
  %323 = vmatmul.mubr.f32.gmra.mrb[0].mxu0 %v155
  %v324 = vpop.f32.mrb[0].mxu0
  %v325 = vadd.f32 %v116, %v324
  %v326 = vpop.f32.mrb[0].mxu0
  %327 = vmatprep.mubr.f32.mxu0 0.0
  %328 = vmatmul.mubr.f32.gmra.mrb[0].mxu0 %v158
  %v329 = vpop.f32.mrb[0].mxu0
  %v330 = vadd.f32 %v121, %v329
  %v331 = vpop.f32.mrb[0].mxu0
  %332 = vdwg.mxu0
  %v333 = vld [vmem:[%s3] sm:$0xff]
  %v334 = vld [vmem:[%s3 + $0x8] sm:$0xff]
  %v335 = vld [vmem:[%s3 + $0x10] sm:$0xff]
  %v336 = vld [vmem:[%s3 + $0x18] sm:$0xff]
  %v337 = vld [vmem:[%s3 + $0x20] sm:$0xff]
  %v338 = vld [vmem:[%s3 + $0x28] sm:$0xff]
  %v339 = vld [vmem:[%s3 + $0x30] sm:$0xff]
  %v340 = vld [vmem:[%s3 + $0x38] sm:$0xff]
  %v341 = vld [vmem:[%s3 + $0x40] sm:$0xff]
  %v342 = vld [vmem:[%s3 + $0x48] sm:$0xff]
  %v343 = vld [vmem:[%s3 + $0x50] sm:$0xff]
  %v344 = vld [vmem:[%s3 + $0x58] sm:$0xff]
  %v345 = vld [vmem:[%s3 + $0x60] sm:$0xff]
  %v346 = vld [vmem:[%s3 + $0x68] sm:$0xff]
  %v347 = vld [vmem:[%s3 + $0x70] sm:$0xff]
  %v348 = vld [vmem:[%s3 + $0x78] sm:$0xff]
  %v349 = vld [vmem:[%s1] sm:$0xff]
  %v350 = vld [vmem:[%s1 + $0x8] sm:$0xff]
  %v351 = vld [vmem:[%s1 + $0x10] sm:$0xff]
  %v352 = vld [vmem:[%s1 + $0x18] sm:$0xff]
  %v353 = vld [vmem:[%s1 + $0x20] sm:$0xff]
  %v354 = vld [vmem:[%s1 + $0x28] sm:$0xff]
  %v355 = vld [vmem:[%s1 + $0x30] sm:$0xff]
  %v356 = vld [vmem:[%s1 + $0x38] sm:$0xff]
  %v357 = vld [vmem:[%s1 + $0x40] sm:$0xff]
  %v358 = vld [vmem:[%s1 + $0x48] sm:$0xff]
  %v359 = vld [vmem:[%s1 + $0x50] sm:$0xff]
  %v360 = vld [vmem:[%s1 + $0x58] sm:$0xff]
  %v361 = vld [vmem:[%s1 + $0x60] sm:$0xff]
  %v362 = vld [vmem:[%s1 + $0x68] sm:$0xff]
  %v363 = vld [vmem:[%s1 + $0x70] sm:$0xff]
  %v364 = vld [vmem:[%s1 + $0x78] sm:$0xff]
  %v366 = vsel %vm123, %v333, 0
  %v369 = vsel %vm123, %v334, 0
  %v372 = vsel %vm123, %v335, 0
  %v375 = vsel %vm123, %v336, 0
  %v378 = vsel %vm123, %v337, 0
  %v381 = vsel %vm123, %v338, 0
  %v384 = vsel %vm123, %v339, 0
  %v387 = vsel %vm123, %v340, 0
  %v390 = vsel %vm123, %v341, 0
  %v393 = vsel %vm123, %v342, 0
  %v396 = vsel %vm123, %v343, 0
  %v399 = vsel %vm123, %v344, 0
  %v402 = vsel %vm123, %v345, 0
  %v405 = vsel %vm123, %v346, 0
  %v408 = vsel %vm123, %v347, 0
  %v411 = vsel %vm123, %v348, 0
  %v414 = vsel %vm123, %v349, 0
  %v417 = vsel %vm123, %v350, 0
  %v420 = vsel %vm123, %v351, 0
  %v423 = vsel %vm123, %v352, 0
  %v426 = vsel %vm123, %v353, 0
  %v429 = vsel %vm123, %v354, 0
  %v432 = vsel %vm123, %v355, 0
  %v435 = vsel %vm123, %v356, 0
  %v438 = vsel %vm123, %v357, 0
  %v441 = vsel %vm123, %v358, 0
  %v444 = vsel %vm123, %v359, 0
  %v447 = vsel %vm123, %v360, 0
  %v450 = vsel %vm123, %v361, 0
  %v453 = vsel %vm123, %v362, 0
  %v456 = vsel %vm123, %v363, 0
  %v459 = vsel %vm123, %v364, 0
  %461 = vmatprep.subr.mxu0 0.0
  %462 = vmatpush1.xpose.msra.mxu0 %v414
  %463 = vmatprep.subr.mxu0 0.0
  %464 = vmatpush1.xpose.msra.mxu0 %v417
  %465 = vmatprep.subr.mxu0 0.0
  %466 = vmatpush1.xpose.msra.mxu0 %v420
  %467 = vmatprep.subr.mxu0 0.0
  %468 = vmatpush1.xpose.msra.mxu0 %v423
  %469 = vmatprep.subr.mxu0 0.0
  %470 = vmatpush1.xpose.msra.mxu0 %v426
  %471 = vmatprep.subr.mxu0 0.0
  %472 = vmatpush1.xpose.msra.mxu0 %v429
  %473 = vmatprep.subr.mxu0 0.0
  %474 = vmatpush1.xpose.msra.mxu0 %v432
  %475 = vmatprep.subr.mxu0 0.0
  %476 = vmatpush1.xpose.msra.mxu0 %v435
  %477 = vmatprep.subr.mxu0 0.0
  %478 = vmatpush1.xpose.msra.mxu0 %v438
  %479 = vmatprep.subr.mxu0 0.0
  %480 = vmatpush1.xpose.msra.mxu0 %v441
  %481 = vmatprep.subr.mxu0 0.0
  %482 = vmatpush1.xpose.msra.mxu0 %v444
  %483 = vmatprep.subr.mxu0 0.0
  %484 = vmatpush1.xpose.msra.mxu0 %v447
  %485 = vmatprep.subr.mxu0 0.0
  %486 = vmatpush1.xpose.msra.mxu0 %v450
  %487 = vmatprep.subr.mxu0 0.0
  %488 = vmatpush1.xpose.msra.mxu0 %v453
  %489 = vmatprep.subr.mxu0 0.0
  %490 = vmatpush1.xpose.msra.mxu0 %v456
  %491 = vmatprep.subr.mxu0 0.0
  %492 = vmatpush1.xpose.msra.mxu0 %v459
  %493 = vmatprep.subr.mxu0 0.0
  %494 = vmatpush1.xpose.msra.mxu0 0.0
  %495 = vmatprep.subr.mxu0 0.0
  %496 = vmatpush1.xpose.msra.mxu0 0.0
  %497 = vmatprep.subr.mxu0 0.0
  %498 = vmatpush1.xpose.msra.mxu0 0.0
  %499 = vmatprep.subr.mxu0 0.0
  %500 = vmatpush1.xpose.msra.mxu0 0.0
  %501 = vmatprep.subr.mxu0 0.0
  %502 = vmatpush1.xpose.msra.mxu0 0.0
  %503 = vmatprep.subr.mxu0 0.0
  %504 = vmatpush1.xpose.msra.mxu0 0.0
  %505 = vmatprep.subr.mxu0 0.0
  %506 = vmatpush1.xpose.msra.mxu0 0.0
  %507 = vmatprep.subr.mxu0 0.0
  %508 = vmatpush1.xpose.msra.mxu0 0.0
  %509 = vmatprep.subr.mxu0 0.0
  %510 = vmatpush1.xpose.msra.mxu0 0.0
  %511 = vmatprep.subr.mxu0 0.0
  %512 = vmatpush1.xpose.msra.mxu0 0.0
  %513 = vmatprep.subr.mxu0 0.0
  %514 = vmatpush1.xpose.msra.mxu0 0.0
  %515 = vmatprep.subr.mxu0 0.0
  %516 = vmatpush1.xpose.msra.mxu0 0.0
  %517 = vmatprep.subr.mxu0 0.0
  %518 = vmatpush1.xpose.msra.mxu0 0.0
  %519 = vmatprep.subr.mxu0 0.0
  %520 = vmatpush1.xpose.msra.mxu0 0.0
  %521 = vmatprep.subr.mxu0 0.0
  %522 = vmatpush1.xpose.msra.mxu0 0.0
  %523 = vmatprep.subr.mxu0 0.0
  %524 = vmatpush1.xpose.msra.mxu0 0.0
  %525 = vmatprep.mubr.f32.mxu0 0.0
  %526 = vmatmul.mubr.f32.gmra.mrb[0].mxu0 %v366
  %v527 = vpop.f32.mrb[0].mxu0
  %v528 = vadd.f32 0.0, %v527
  %v529 = vpop.f32.mrb[0].mxu0
  %530 = vmatprep.mubr.f32.mxu0 0.0
  %531 = vmatmul.mubr.f32.gmra.mrb[0].mxu0 %v369
  %v532 = vpop.f32.mrb[0].mxu0
  %v533 = vadd.f32 0.0, %v532
  %v534 = vpop.f32.mrb[0].mxu0
  %535 = vmatprep.mubr.f32.mxu0 0.0
  %536 = vmatmul.mubr.f32.gmra.mrb[0].mxu0 %v372
  %v537 = vpop.f32.mrb[0].mxu0
  %v538 = vadd.f32 0.0, %v537
  %v539 = vpop.f32.mrb[0].mxu0
  %540 = vmatprep.mubr.f32.mxu0 0.0
  %541 = vmatmul.mubr.f32.gmra.mrb[0].mxu0 %v375
  %v542 = vpop.f32.mrb[0].mxu0
  %v543 = vadd.f32 0.0, %v542
  %v544 = vpop.f32.mrb[0].mxu0
  %545 = vmatprep.mubr.f32.mxu0 0.0
  %546 = vmatmul.mubr.f32.gmra.mrb[0].mxu0 %v378
  %v547 = vpop.f32.mrb[0].mxu0
  %v548 = vadd.f32 0.0, %v547
  %v549 = vpop.f32.mrb[0].mxu0
  %550 = vmatprep.mubr.f32.mxu0 0.0
  %551 = vmatmul.mubr.f32.gmra.mrb[0].mxu0 %v381
  %v552 = vpop.f32.mrb[0].mxu0
  %v553 = vadd.f32 0.0, %v552
  %v554 = vpop.f32.mrb[0].mxu0
  %555 = vmatprep.mubr.f32.mxu0 0.0
  %556 = vmatmul.mubr.f32.gmra.mrb[0].mxu0 %v384
  %v557 = vpop.f32.mrb[0].mxu0
  %v558 = vadd.f32 0.0, %v557
  %v559 = vpop.f32.mrb[0].mxu0
  %560 = vmatprep.mubr.f32.mxu0 0.0
  %561 = vmatmul.mubr.f32.gmra.mrb[0].mxu0 %v387
  %v562 = vpop.f32.mrb[0].mxu0
  %v563 = vadd.f32 0.0, %v562
  %v564 = vpop.f32.mrb[0].mxu0
  %565 = vmatprep.mubr.f32.mxu0 0.0
  %566 = vmatmul.mubr.f32.gmra.mrb[0].mxu0 %v390
  %v567 = vpop.f32.mrb[0].mxu0
  %v568 = vadd.f32 0.0, %v567
  %v569 = vpop.f32.mrb[0].mxu0
  %570 = vmatprep.mubr.f32.mxu0 0.0
  %571 = vmatmul.mubr.f32.gmra.mrb[0].mxu0 %v393
  %v572 = vpop.f32.mrb[0].mxu0
  %v573 = vadd.f32 0.0, %v572
  %v574 = vpop.f32.mrb[0].mxu0
  %575 = vmatprep.mubr.f32.mxu0 0.0
  %576 = vmatmul.mubr.f32.gmra.mrb[0].mxu0 %v396
  %v577 = vpop.f32.mrb[0].mxu0
  %v578 = vadd.f32 0.0, %v577
  %v579 = vpop.f32.mrb[0].mxu0
  %580 = vmatprep.mubr.f32.mxu0 0.0
  %581 = vmatmul.mubr.f32.gmra.mrb[0].mxu0 %v399
  %v582 = vpop.f32.mrb[0].mxu0
  %v583 = vadd.f32 0.0, %v582
  %v584 = vpop.f32.mrb[0].mxu0
  %585 = vmatprep.mubr.f32.mxu0 0.0
  %586 = vmatmul.mubr.f32.gmra.mrb[0].mxu0 %v402
  %v587 = vpop.f32.mrb[0].mxu0
  %v588 = vadd.f32 0.0, %v587
  %v589 = vpop.f32.mrb[0].mxu0
  %590 = vmatprep.mubr.f32.mxu0 0.0
  %591 = vmatmul.mubr.f32.gmra.mrb[0].mxu0 %v405
  %v592 = vpop.f32.mrb[0].mxu0
  %v593 = vadd.f32 0.0, %v592
  %v594 = vpop.f32.mrb[0].mxu0
  %595 = vmatprep.mubr.f32.mxu0 0.0
  %596 = vmatmul.mubr.f32.gmra.mrb[0].mxu0 %v408
  %v597 = vpop.f32.mrb[0].mxu0
  %v598 = vadd.f32 0.0, %v597
  %v599 = vpop.f32.mrb[0].mxu0
  %600 = vmatprep.mubr.f32.mxu0 0.0
  %601 = vmatmul.mubr.f32.gmra.mrb[0].mxu0 %v411
  %v602 = vpop.f32.mrb[0].mxu0
  %v603 = vadd.f32 0.0, %v602
  %v604 = vpop.f32.mrb[0].mxu0
  %605 = vdwg.mxu0
  %v606 = vadd.f32 %v275, %v528
  %v607 = vadd.f32 %v280, %v533
  %v608 = vadd.f32 %v285, %v538
  %v609 = vadd.f32 %v290, %v543
  %v610 = vadd.f32 %v295, %v548
  %v611 = vadd.f32 %v300, %v553
  %v612 = vadd.f32 %v305, %v558
  %v613 = vadd.f32 %v310, %v563
  %v614 = vmul.f32 %v606, 0.5
  %v615 = vmul.f32 %v607, 0.5
  %v616 = vmul.f32 %v608, 0.5
  %v617 = vmul.f32 %v609, 0.5
  %v618 = vmul.f32 %v610, 0.5
  %v619 = vmul.f32 %v611, 0.5
  %v620 = vmul.f32 %v612, 0.5
  %v621 = vmul.f32 %v613, 0.5
  %v622 = vtanh.pop %v614
  %v623 = vtanh.pop %v615
  %v624 = vtanh.pop %v616
  %v625 = vtanh.pop %v617
  %v626 = vtanh.pop %v618
  %v627 = vtanh.pop %v619
  %v628 = vtanh.pop %v620
  %v629 = vtanh.pop %v621
  %v630 = vmul.f32 %v622, 0.5
  %v631 = vmul.f32 %v623, 0.5
  %v632 = vmul.f32 %v624, 0.5
  %v633 = vmul.f32 %v625, 0.5
  %v634 = vmul.f32 %v626, 0.5
  %v635 = vmul.f32 %v627, 0.5
  %v636 = vmul.f32 %v628, 0.5
  %v637 = vmul.f32 %v629, 0.5
  %v638 = vadd.f32 %v630, 0.5
  %v639 = vadd.f32 %v631, 0.5
  %v640 = vadd.f32 %v632, 0.5
  %v641 = vadd.f32 %v633, 0.5
  %v642 = vadd.f32 %v634, 0.5
  %v643 = vadd.f32 %v635, 0.5
  %v644 = vadd.f32 %v636, 0.5
  %v645 = vadd.f32 %v637, 0.5
  %v646 = vld [vmem:[%s5] sm:$0xff]
  %v647 = vld [vmem:[%s5 + $0x8] sm:$0xff]
  %v648 = vld [vmem:[%s5 + $0x10] sm:$0xff]
  %v649 = vld [vmem:[%s5 + $0x18] sm:$0xff]
  %651 = vset.pattern.permute.xlu0 0
  %652 = vperm.xlu0 %651, %v646
  %v653 = vpop.permute.xlu0 %652
  %656 = vset.pattern.permute.xlu0 0
  %657 = vperm.xlu0 %656, %v647
  %v658 = vpop.permute.xlu0 %657
  %661 = vset.pattern.permute.xlu0 0
  %662 = vperm.xlu0 %661, %v648
  %v663 = vpop.permute.xlu0 %662
  %666 = vset.pattern.permute.xlu0 0
  %667 = vperm.xlu0 %666, %v649
  %v668 = vpop.permute.xlu0 %667
  %v670 = vadd.f32 %v568, %v653
  %v671 = vadd.f32 %v573, %v658
  %v672 = vadd.f32 %v578, %v663
  %v673 = vadd.f32 %v583, %v668
  %v674 = vmul.f32 %v638, %v670
  %v675 = vmul.f32 %v639, %v671
  %v676 = vmul.f32 %v640, %v672
  %v677 = vmul.f32 %v641, %v673
  %v678 = vadd.f32 %v315, %v674
  %v679 = vadd.f32 %v320, %v675
  %v680 = vadd.f32 %v325, %v676
  %v681 = vadd.f32 %v330, %v677
  %v682 = vtanh.pop %v678
  %v683 = vtanh.pop %v679
  %v684 = vtanh.pop %v680
  %v685 = vtanh.pop %v681
  %v686 = vsub.f32 %v588, %v682
  %v687 = vsub.f32 %v593, %v683
  %v688 = vsub.f32 %v598, %v684
  %v689 = vsub.f32 %v603, %v685
  %v690 = vmul.f32 %v642, %v686
  %v691 = vmul.f32 %v643, %v687
  %v692 = vmul.f32 %v644, %v688
  %v693 = vmul.f32 %v645, %v689
  %v694 = vadd.f32 %v682, %v690
  %v695 = vadd.f32 %v683, %v691
  %v696 = vadd.f32 %v684, %v692
  %v697 = vadd.f32 %v685, %v693
  %698 = vxpose.xlu0.b32.start [1/16] %v694, 128
  %699 = vxpose.xlu0.b32.cont [2/16] %v695, 128
  %700 = vxpose.xlu0.b32.cont [3/16] %v696, 128
  %701 = vxpose.xlu0.b32.cont [4/16] %v697, 128
  %702 = vxpose.xlu0.b32.cont [5/16] 0.0, 128
  %703 = vxpose.xlu0.b32.cont [6/16] 0.0, 128
  %704 = vxpose.xlu0.b32.cont [7/16] 0.0, 128
  %705 = vxpose.xlu0.b32.cont [8/16] 0.0, 128
  %706 = vxpose.xlu0.b32.cont [9/16] 0.0, 128
  %707 = vxpose.xlu0.b32.cont [10/16] 0.0, 128
  %708 = vxpose.xlu0.b32.cont [11/16] 0.0, 128
  %709 = vxpose.xlu0.b32.cont [12/16] 0.0, 128
  %710 = vxpose.xlu0.b32.cont [13/16] 0.0, 128
  %711 = vxpose.xlu0.b32.cont [14/16] 0.0, 128
  %712 = vxpose.xlu0.b32.cont [15/16] 0.0, 128
  %713 = vxpose.xlu0.b32.end [16/16] 0.0, 128
  %v714 = vpop.trf.xlu0
  %v715 = vpop.trf.xlu0
  %v716 = vpop.trf.xlu0
  %v717 = vpop.trf.xlu0
  %v718 = vpop.trf.xlu0
  %v719 = vpop.trf.xlu0
  %v720 = vpop.trf.xlu0
  %v721 = vpop.trf.xlu0
  %v722 = vpop.trf.xlu0
  %v723 = vpop.trf.xlu0
  %v724 = vpop.trf.xlu0
  %v725 = vpop.trf.xlu0
  %v726 = vpop.trf.xlu0
  %v727 = vpop.trf.xlu0
  %v728 = vpop.trf.xlu0
  %v729 = vpop.trf.xlu0
  %730 = vst.msk [vmem:[%s6] sm:$0xff] %vm123, %v714
  %731 = vst.msk [vmem:[%s6 + $0x8] sm:$0xff] %vm123, %v715
  %732 = vst.msk [vmem:[%s6 + $0x10] sm:$0xff] %vm123, %v716
  %733 = vst.msk [vmem:[%s6 + $0x18] sm:$0xff] %vm123, %v717
  %734 = vst.msk [vmem:[%s6 + $0x20] sm:$0xff] %vm123, %v718
  %735 = vst.msk [vmem:[%s6 + $0x28] sm:$0xff] %vm123, %v719
  %736 = vst.msk [vmem:[%s6 + $0x30] sm:$0xff] %vm123, %v720
  %737 = vst.msk [vmem:[%s6 + $0x38] sm:$0xff] %vm123, %v721
  %738 = vst.msk [vmem:[%s6 + $0x40] sm:$0xff] %vm123, %v722
  %739 = vst.msk [vmem:[%s6 + $0x48] sm:$0xff] %vm123, %v723
  %740 = vst.msk [vmem:[%s6 + $0x50] sm:$0xff] %vm123, %v724
  %741 = vst.msk [vmem:[%s6 + $0x58] sm:$0xff] %vm123, %v725
  %742 = vst.msk [vmem:[%s6 + $0x60] sm:$0xff] %vm123, %v726
  %743 = vst.msk [vmem:[%s6 + $0x68] sm:$0xff] %vm123, %v727
  %744 = vst.msk [vmem:[%s6 + $0x70] sm:$0xff] %vm123, %v728
  %745 = vst.msk [vmem:[%s6 + $0x78] sm:$0xff] %vm123, %v729
  // Predicated region
  $region26: #{gru_forward.1} parent=0 // pred_check
    _
  $region27: #{gru_forward.1} parent=0 // pred_check_branch
    %747 = sbr.rel (0) target = $region29
  $region28: #{gru_forward.1} parent=0 // pred_region
    _
  $region29: #{gru_forward.1} parent=0 // pred_fallthru
    _
  // Predicated region
  $region30: #{gru_forward.1} parent=0 // pred_check
    _
  $region31: #{gru_forward.1} parent=0 // pred_check_branch
    %749 = sbr.rel (0) target = $region33
  $region32: #{gru_forward.1} parent=0 // pred_region
    _
  $region33: #{gru_forward.1} parent=0 // pred_fallthru
    _

</llo_original>
